<compile_context>
chip_gen: v6e
topology: v6e:2x2x1
jax: 0.10.0
libtpu: 0.0.40
codegen_flags: <defaults>
</compile_context>

<pallas_src>
import functools

import jax
import jax.numpy as jnp
from jax.experimental import pallas as pl
from jax.experimental.pallas import tpu as pltpu

_LANE = 128


def _sumsq_kernel(x1_ref, x2_ref, o_ref, acc_ref, *,
                  tm, lane, rows, nb, nbh, nc, acc_rows):
    c = pl.program_id(0)   # core-split axis (size nc)
    i = pl.program_id(1)   # streaming / reduction axis ("arbitrary")

    @pl.when(i == 0)
    def _():
        acc_ref[...] = jnp.zeros_like(acc_ref)

    d = x1_ref[...].astype(jnp.float32) - x2_ref[...].astype(jnp.float32)
    sq = d * d

    def fold(v):
        # (tm, lane) -> (acc_rows, lane): independent partial sums per vreg
        # (restores ILP in the accumulation instead of one long vadd chain).
        if tm == acc_rows:
            return v
        return v.reshape(tm // acc_rows, acc_rows, lane).sum(axis=0)

    # Masking is only needed for the partial last block and (when nc == 2 and
    # nb is odd) the clamped duplicate block of the second core-half.
    need_mask = (rows != nb * tm) or (nc * nbh != nb)
    if not need_mask:
        acc_ref[...] += fold(sq)
    else:
        g = c * nbh + i   # un-clamped global block index

        @pl.when(g < nb - 1)
        def _():
            acc_ref[...] += fold(sq)

        @pl.when(g >= nb - 1)
        def _():
            row_ids = g * tm + jax.lax.broadcasted_iota(jnp.int32, (tm, 1), 0)
            # Keep the select form (not a multiply) so OOB garbage NaN/Inf
            # never reaches the accumulator.
            masked = jnp.where(row_ids < rows, sq, 0.0)
            acc_ref[...] += fold(masked)

    @pl.when(i == pl.num_programs(1) - 1)
    def _():
        # One final cross-lane/sublane reduce per core-half.
        o_ref[...] = jnp.sum(acc_ref[...], keepdims=True)


def norm_distance(x1, x2, *, block_rows=8192, core_split=None):
    """Pallas equivalent of torch.dist(x1, x2, 2). Returns a float32 scalar."""
    assert x1.shape == x2.shape, "NormDistance expects same-shaped inputs"
    lane = _LANE

    x1f = x1.reshape(-1)
    x2f = x2.reshape(-1)
    n = x1f.shape[0]

    rows = n // lane          # complete 128-lane rows
    kern_n = rows * lane

    # Inputs smaller than one (8, 128) tile: just use plain jnp (tiny).
    if rows < 8:
        d = x1f.astype(jnp.float32) - x2f.astype(jnp.float32)
        return jnp.sqrt(jnp.sum(d * d))

    # Tail past the last complete 128-lane row (< 128 elements): plain jnp.
    if kern_n < n:
        # TODO(synk): for n % 128 != 0 the prefix slice may materialize a copy
        # of each input (one extra HBM pass); removing it needs an in-kernel
        # 1-D tail path.  128-aligned inputs (the common NCHW case) are
        # zero-copy.
        t1 = x1f[kern_n:].astype(jnp.float32)
        t2 = x2f[kern_n:].astype(jnp.float32)
        tail_sumsq = jnp.sum((t1 - t2) ** 2)
        x1m = x1f[:kern_n].reshape(rows, lane)
        x2m = x2f[:kern_n].reshape(rows, lane)
    else:
        tail_sumsq = jnp.float32(0.0)
        x1m = x1f.reshape(rows, lane)   # free reshape, no copy
        x2m = x2f.reshape(rows, lane)

    # Dtype-aware minimum sublane tile: 8 (4-byte), 16 (2-byte), 32 (1-byte).
    itemsize = max(jnp.dtype(x1m.dtype).itemsize, jnp.dtype(x2m.dtype).itemsize)
    pack = {4: 8, 2: 16, 1: 32}.get(int(itemsize), 8)

    # Block rows: multiple of the sublane pack, capped so 2 inputs x 2
    # pipeline buffers stay comfortably inside v7x's 64 MiB VMEM.
    max_rows_fit = max(pack, (10 << 20) // (lane * int(itemsize)))
    tm = min(block_rows, rows, max_rows_fit)
    tm = (tm // pack) * pack
    if tm == 0:
        tm = rows             # single full-extent block (always legal)

    nb = pl.cdiv(rows, tm)    # total row-blocks

    # Core split: 2 on multi-TensorCore chips (v7x), else 1 (v5e/v6e).
    nc = core_split
    if nc is None:
        try:
            kind = jax.devices()[0].device_kind.lower()
        except Exception:
            kind = ""
        nc = 2 if "v7" in kind else 1
    nc = max(1, min(int(nc), 2, nb))
    nbh = pl.cdiv(nb, nc)     # row-blocks per core-half

    # Wide accumulator: largest "nice" divisor of tm (breaks the serial chain).
    acc_rows = tm
    for cand in (128, 64, 32, 16, 8):
        if tm % cand == 0:
            acc_rows = cand
            break

    if nc == 1:
        def in_map(c, i):
            return (i, 0)
    else:
        def in_map(c, i):
            # Clamp so the second half never indexes past the last real block;
            # the duplicate block's contribution is masked to zero in-kernel.
            return (jnp.minimum(c * nbh + i, nb - 1), 0)

    dim_sem = ((pltpu.CORE_PARALLEL if nc == 2 else pltpu.ARBITRARY),
               pltpu.ARBITRARY)

    kernel = functools.partial(
        _sumsq_kernel, tm=tm, lane=lane, rows=rows, nb=nb, nbh=nbh, nc=nc,
        acc_rows=acc_rows)

    partials = pl.pallas_call(
        kernel,
        out_shape=jax.ShapeDtypeStruct((nc, 1), jnp.float32),
        grid_spec=pltpu.PrefetchScalarGridSpec(
            num_scalar_prefetch=0,
            grid=(nc, nbh),
            in_specs=[
                pl.BlockSpec((tm, lane), in_map),
                pl.BlockSpec((tm, lane), in_map),
            ],
            out_specs=pl.BlockSpec((1, 1), lambda c, i: (c, 0)),
            scratch_shapes=[pltpu.VMEM((acc_rows, lane), jnp.float32)],
        ),
        compiler_params=pltpu.CompilerParams(
            dimension_semantics=dim_sem,
            vmem_limit_bytes=48 << 20,
        ),
    )(x1m, x2m)

    return jnp.sqrt(jnp.sum(partials) + tail_sumsq)


if __name__ == "__main__":
    key = jax.random.PRNGKey(0)
    k1, k2 = jax.random.split(key)

    # small NCHW inputs consistent with typical use of the module
    x1 = jax.random.normal(k1, (2, 4, 16, 16), dtype=jnp.float32)
    x2 = jax.random.normal(k2, (2, 4, 16, 16), dtype=jnp.float32)

    dist = norm_distance(x1, x2)
    dist = jax.block_until_ready(dist)

    # pure-JAX reference: torch.dist(x1, x2, 2) == sqrt(sum((x1 - x2)^2))
    ref = jnp.sqrt(jnp.sum((x1 - x2) ** 2))
    assert jnp.allclose(dist, ref, rtol=1e-5, atol=1e-5), (dist, ref)

    print("KERNEL_OK")
</pallas_src>

<mosaic_0001>
module attributes {stable_mosaic.version = 11 : i64} {
  func.func @_sumsq_kernel(%arg0: i32, %arg1: i32, %arg2: memref<16x128xf32, #tpu.memory_space<vmem>>, %arg3: memref<16x128xf32, #tpu.memory_space<vmem>>, %arg4: memref<1x1xf32, #tpu.memory_space<vmem>>, %arg5: memref<16x128xf32, #tpu.memory_space<vmem>>) attributes {dimension_semantics = [#tpu.dimension_semantics<arbitrary>, #tpu.dimension_semantics<arbitrary>], iteration_bounds = array<i64: 1, 1>, scalar_prefetch = 0 : i64, scratch_operands = 1 : i64, tpu.core_type = #tpu.core_type<tc>, window_params = [{transform_indices = @transform_0, window_bounds = array<i64: 16, 128>}, {transform_indices = @transform_1, window_bounds = array<i64: 16, 128>}, {transform_indices = @transform_2, window_bounds = array<i64: 1, 1>}]} {
    %c0_i32 = arith.constant 0 : i32
    %0 = arith.cmpi eq, %arg1, %c0_i32 : i32
    %1 = arith.extui %0 : i1 to i32
    %c0_i32_0 = arith.constant 0 : i32
    %2 = arith.cmpi ne, %1, %c0_i32_0 : i32
    scf.if %2 {
      %cst = arith.constant 0.000000e+00 : f32
      %13 = vector.broadcast %cst : f32 to vector<16x128xf32>
      %c0_10 = arith.constant 0 : index
      %c0_11 = arith.constant 0 : index
      %14 = vector.load %arg5[%c0_10, %c0_11] : memref<16x128xf32, #tpu.memory_space<vmem>>, vector<16x128xf32>
      tpu.vector_store %arg5[%c0_10, %c0_11], %13 {strides = array<i32>} : memref<16x128xf32, #tpu.memory_space<vmem>>, vector<16x128xf32>,
    } else {
    }
    %c0 = arith.constant 0 : index
    %c0_1 = arith.constant 0 : index
    %3 = vector.load %arg2[%c0, %c0_1] : memref<16x128xf32, #tpu.memory_space<vmem>>, vector<16x128xf32>
    %c0_2 = arith.constant 0 : index
    %c0_3 = arith.constant 0 : index
    %4 = vector.load %arg3[%c0_2, %c0_3] : memref<16x128xf32, #tpu.memory_space<vmem>>, vector<16x128xf32>
    %5 = arith.subf %3, %4 : vector<16x128xf32>
    %6 = arith.mulf %5, %5 : vector<16x128xf32>
    %c0_4 = arith.constant 0 : index
    %c0_5 = arith.constant 0 : index
    %7 = vector.load %arg5[%c0_4, %c0_5] : memref<16x128xf32, #tpu.memory_space<vmem>>, vector<16x128xf32>
    %8 = arith.addf %7, %6 : vector<16x128xf32>
    %c0_6 = arith.constant 0 : index
    %c0_7 = arith.constant 0 : index
    %9 = vector.load %arg5[%c0_6, %c0_7] : memref<16x128xf32, #tpu.memory_space<vmem>>, vector<16x128xf32>
    tpu.vector_store %arg5[%c0_6, %c0_7], %8 {strides = array<i32>} : memref<16x128xf32, #tpu.memory_space<vmem>>, vector<16x128xf32>,
    %c0_i32_8 = arith.constant 0 : i32
    %10 = arith.cmpi eq, %arg1, %c0_i32_8 : i32
    %11 = arith.extui %10 : i1 to i32
    %c0_i32_9 = arith.constant 0 : i32
    %12 = arith.cmpi ne, %11, %c0_i32_9 : i32
    scf.if %12 {
      %c0_10 = arith.constant 0 : index
      %c0_11 = arith.constant 0 : index
      %13 = vector.load %arg5[%c0_10, %c0_11] : memref<16x128xf32, #tpu.memory_space<vmem>>, vector<16x128xf32>
      %14 = vector.shape_cast %13 : vector<16x128xf32> to vector<1x16x128xf32>
      %cst = arith.constant dense<0.000000e+00> : vector<1xf32>
      %15 = vector.multi_reduction <add>, %14, %cst [1, 2] : vector<1x16x128xf32> to vector<1xf32>
      %16 = vector.shape_cast %15 : vector<1xf32> to vector<1x1x1xf32>
      %17 = vector.extract %16[0, 0, 0] : f32 from vector<1x1x1xf32>
      %18 = vector.broadcast %17 : f32 to vector<1x1xf32>
      %c0_12 = arith.constant 0 : index
      %c0_13 = arith.constant 0 : index
      %19 = vector.load %arg4[%c0_12, %c0_13] : memref<1x1xf32, #tpu.memory_space<vmem>>, vector<1x1xf32>
      tpu.vector_store %arg4[%c0_12, %c0_13], %18 {strides = array<i32>} : memref<1x1xf32, #tpu.memory_space<vmem>>, vector<1x1xf32>,
    } else {
    }
    return
  }
  func.func @transform_0(%arg0: i32, %arg1: i32) -> (i32, i32) {
    %c0_i32 = arith.constant 0 : i32
    %c0_i32_0 = arith.constant 0 : i32
    return %arg1, %c0_i32 : i32, i32
  }
  func.func @transform_1(%arg0: i32, %arg1: i32) -> (i32, i32) {
    %c0_i32 = arith.constant 0 : i32
    %c0_i32_0 = arith.constant 0 : i32
    return %arg1, %c0_i32 : i32, i32
  }
  func.func @transform_2(%arg0: i32, %arg1: i32) -> (i32, i32) {
    %c0_i32 = arith.constant 0 : i32
    %c0_i32_0 = arith.constant 0 : i32
    return %arg0, %c0_i32 : i32, i32
  }
}

</mosaic_0001>

<llo_original>
// kernel: tpu_custom_call.1
$region0: #{tpu_custom_call.1}
  #allocation0 [shape = 'u32[]', space=smem, size = 0x4, offset = 0x4, fixed_abs, tag = 'smem constant byte address 0x4 - core index']
  #allocation1 [shape = 'u32[144,128]{1,0:T(1,128)}', space=vmem, size = 0x12000, scoped, tag = 'internal scratch']
  #allocation2 [shape = 'f32[16,128]{1,0:T(8,128)}', space=vmem, size = 0x2000, scoped, tag = 'scratch operand']
  %s0 = inlined_call_operand.hbm [shape: f32[16,128], index: 0, kind: input, shape index: {}]
  %s1 = inlined_call_operand.hbm [shape: f32[16,128], index: 1, kind: input, shape index: {}]
  %s2 = inlined_call_operand.hbm [shape: f32[1,1], index: 2, kind: output, shape index: {}]
  %s3 = sld [smem:[#allocation0]]
  $region34: #{tpu_custom_call.1} parent=0
    _
  %s5 = ssub.s32 1, %s3
  %s6 = scalar_select 0, %s5, %s3
  $region1: #{tpu_custom_call.1} parent=0
    #allocation3 [shape = 'u8[8192]{0}', space=vmem, size = 0x2000, scoped, tag = 'input window, operand 0, single buffered']
    #allocation4 [shape = 's32[1]{0}', space=sflag, size = 0x4, scoped, tag = 'scoped memory for tpu_custom_call.1']
    #allocation5 [shape = 's32[1]{0}', space=sflag, size = 0x4, scoped, tag = 'scoped memory for tpu_custom_call.1']
    #allocation6 [shape = 'u8[8192]{0}', space=vmem, size = 0x2000, scoped, tag = 'input window, operand 1, single buffered']
    #allocation7 [shape = 's32[1]{0}', space=sflag, size = 0x4, scoped, tag = 'scoped memory for tpu_custom_call.1']
    #allocation8 [shape = 'u8[512]{0}', space=vmem, size = 0x400, scoped, tag = 'output window, operand 0, single buffered']
    %7 = vsyncpa [#allocation4], 0
    %8 = vsyncpa [#allocation7], 0
    %9 = vsyncpa [#allocation5], 0
    // Predicated region
    $region2: #{tpu_custom_call.1} parent=1 // pred_check
      _
    $region3: #{tpu_custom_call.1} parent=1 // pred_check_branch
      %11 = sbr.rel (0) target = $region5
    $region4: #{tpu_custom_call.1} parent=1 // pred_region
      %s13 = ssub.s32 256, 256
      %14 = vsyncadd [#allocation4], %s13
      %s15 = sshll.u32 [#allocation3], 4
      %s16 = int_to_ptr.vmem [resolvable:$true] %s15
      %21 = dma.hbm_to_vmem [thread:$0]  %s0, 256, %s16, [#allocation4], 128, 128, 8
    $region5: #{tpu_custom_call.1} parent=1 // pred_fallthru
      _
    // Predicated region
    $region6: #{tpu_custom_call.1} parent=1 // pred_check
      _
    $region7: #{tpu_custom_call.1} parent=1 // pred_check_branch
      %23 = sbr.rel (0) target = $region9
    $region8: #{tpu_custom_call.1} parent=1 // pred_region
      %s25 = ssub.s32 256, 256
      %26 = vsyncadd [#allocation7], %s25
      %s27 = sshll.u32 [#allocation6], 4
      %s28 = int_to_ptr.vmem [resolvable:$true] %s27
      %33 = dma.hbm_to_vmem [thread:$0]  %s1, 256, %s28, [#allocation7], 128, 128, 8
    $region9: #{tpu_custom_call.1} parent=1 // pred_fallthru
      _
    // Predicated region
    $region10: #{tpu_custom_call.1} parent=1 // pred_check
      _
    $region11: #{tpu_custom_call.1} parent=1 // pred_check_branch
      %35 = sbr.rel (0) target = $region13
    $region12: #{tpu_custom_call.1} parent=1 // pred_region
      %36 = dma.done [#allocation4], 256
    $region13: #{tpu_custom_call.1} parent=1 // pred_fallthru
      _
    // Predicated region
    $region14: #{tpu_custom_call.1} parent=1 // pred_check
      _
    $region15: #{tpu_custom_call.1} parent=1 // pred_check_branch
      %38 = sbr.rel (0) target = $region17
    $region16: #{tpu_custom_call.1} parent=1 // pred_region
      %39 = dma.done [#allocation7], 256
    $region17: #{tpu_custom_call.1} parent=1 // pred_fallthru
      _
    %p40 = scmp.eq.s32.totalorder 0, 0
    // Predicated region
    $region18: #{tpu_custom_call.1} parent=1 // pred_check
      %p41 = pneg %p40
    $region19: #{tpu_custom_call.1} parent=1 // pred_check_branch
      %43 = sbr.rel (%p41) target = $region21
    $region20: #{tpu_custom_call.1} parent=1 // pred_region
      %44 = vst [vmem:[#allocation2] sm:$0xff] 0.0
      %45 = vst [vmem:[#allocation2 + $0x8] sm:$0xff] 0.0
    $region21: #{tpu_custom_call.1} parent=1 // pred_fallthru
      _
    %v46 = vld [vmem:[#allocation3] sm:$0xff]
    %v47 = vld [vmem:[#allocation3 + $0x8] sm:$0xff]
    %v48 = vld [vmem:[#allocation6] sm:$0xff]
    %v49 = vld [vmem:[#allocation6 + $0x8] sm:$0xff]
    %v50 = vsub.f32 %v46, %v48
    %v51 = vsub.f32 %v47, %v49
    %v52 = vmul.f32 %v50, %v50
    %v53 = vmul.f32 %v51, %v51
    %v54 = vld [vmem:[#allocation2] sm:$0xff]
    %v55 = vld [vmem:[#allocation2 + $0x8] sm:$0xff]
    %v56 = vadd.f32 %v54, %v52
    %v57 = vadd.f32 %v55, %v53
    %58 = vst [vmem:[#allocation2] sm:$0xff] %v56
    %59 = vst [vmem:[#allocation2 + $0x8] sm:$0xff] %v57
    // Predicated region
    $region22: #{tpu_custom_call.1} parent=1 // pred_check
      %p60 = pneg %p40
    $region23: #{tpu_custom_call.1} parent=1 // pred_check_branch
      %62 = sbr.rel (%p60) target = $region25
    $region24: #{tpu_custom_call.1} parent=1 // pred_region
      %v63 = vld [vmem:[#allocation2] sm:$0xff]
      %v64 = vld [vmem:[#allocation2 + $0x8] sm:$0xff]
      %v65 = vadd.f32 %v63, %v64
      %66 = vadd.xlane.f32.xlu0 %v65
      %v67 = vpop.xlane.xlu0 %66
      %v68 = vrot.slane %v67, 4
      %v69 = vadd.f32 %v67, %v68
      %v70 = vrot.slane %v69, 2
      %v71 = vadd.f32 %v69, %v70
      %v72 = vrot.slane %v71, 1
      %v73 = vadd.f32 %v71, %v72
      %s74 = vtos %v73
      %v75 = vstv %s74
      %vm76 = vcmask 0
      %77 = vst.msk [vmem:[#allocation8] sm:$0x1] %vm76, %v75
    $region25: #{tpu_custom_call.1} parent=1 // pred_fallthru
      _
    // Predicated region
    $region26: #{tpu_custom_call.1} parent=1 // pred_check
      _
    $region27: #{tpu_custom_call.1} parent=1 // pred_check_branch
      %79 = sbr.rel (0) target = $region29
    $region28: #{tpu_custom_call.1} parent=1 // pred_region
      %s81 = ssub.s32 16, 16
      %82 = vsyncadd [#allocation5], %s81
      %s84 = sshll.u32 [#allocation8], 4
      %s85 = int_to_ptr.vmem [resolvable:$true] %s84
      %87 = dma.vmem_to_hbm [thread:$0]  %s85, 16, %s2, [#allocation5]
    $region29: #{tpu_custom_call.1} parent=1 // pred_fallthru
      _
    // Predicated region
    $region30: #{tpu_custom_call.1} parent=1 // pred_check
      _
    $region31: #{tpu_custom_call.1} parent=1 // pred_check_branch
      %89 = sbr.rel (0) target = $region33
    $region32: #{tpu_custom_call.1} parent=1 // pred_region
      %90 = dma.done [#allocation5], 16
    $region33: #{tpu_custom_call.1} parent=1 // pred_fallthru
      _
    %91 = vsyncpa [#allocation4], 1
    %92 = vsyncpa [#allocation7], 1
    %93 = vsyncpa [#allocation5], 1

</llo_original>
